<compile_context>
chip_gen: v7x
topology: tpu7x:2x2x1
jax: 0.10.0
libtpu: 0.0.40
codegen_flags: <defaults>
</compile_context>

<pallas_src>
import functools

import jax
import jax.numpy as jnp
from jax import lax
from jax.experimental import pallas as pl
from jax.experimental.pallas import tpu as pltpu


def _soft_iou_kernel(x_ref, t_ref, out_ref, inter_acc, sums_acc, *, apply_mask):
    # x_ref:   (1, C, T) logits tile (native dtype) for one batch element
    # t_ref:   (1, 1, T) int8/int32 label tile
    # out_ref: (1, C, 128) f32 per-class IoU ratios (written on the last tile)
    # inter_acc, sums_acc: (C, 1) f32 VMEM accumulators, resident across tiles
    s = pl.program_id(1)

    @pl.when(s == 0)
    def _():
        inter_acc[...] = jnp.zeros_like(inter_acc)
        sums_acc[...] = jnp.zeros_like(sums_acc)

    x = x_ref[0].astype(jnp.float32)          # (C, T) upcast in-kernel
    tgt = t_ref[0].astype(jnp.int32)          # (1, T)
    C, T = x.shape

    # Softmax over the class (sublane) axis; one reciprocal per pixel instead
    # of C divisions per pixel.  approx=False keeps the 1e-5 tolerance.
    m = jnp.max(x, axis=0, keepdims=True)                       # (1, T)
    e = jnp.exp(x - m)                                          # (C, T)
    inv = pl.reciprocal(jnp.sum(e, axis=0, keepdims=True))      # (1, T)
    pred = e * inv                                              # (C, T)

    if apply_mask:  # zero out spatial padding (labels padded with class == C)
        pred = pred * (tgt < C).astype(jnp.float32)

    # One-hot of the target along the class axis.
    class_iota = lax.broadcasted_iota(jnp.int32, (C, T), 0)
    onehot = (class_iota == tgt).astype(jnp.float32)            # (C, T)

    # union = sum(pred) + sum(onehot) - inter   (no (C, T) union temporary)
    inter_acc[...] += jnp.sum(pred * onehot, axis=1, keepdims=True)
    sums_acc[...] += (jnp.sum(pred, axis=1, keepdims=True)
                      + jnp.sum(onehot, axis=1, keepdims=True))

    @pl.when(s == pl.num_programs(1) - 1)
    def _():
        inter = inter_acc[...]
        union = sums_acc[...] - inter
        ratio = inter / (union + 1e-16)                         # (C, 1)
        out_ref[0] = jnp.broadcast_to(ratio, (C, 128))          # lane-dense store


def soft_iou_loss(logits, target, n_classes, *, max_tile=32768):
    """logits: (N, C, H, W), target: (N, H, W) int -> scalar loss."""
    N, C, H, W = logits.shape
    assert C == n_classes
    HW = H * W

    # Spatial tile: multiple of 128 lanes, sized so the double-buffered
    # (logits + target) footprint stays well under the scoped VMEM limit on
    # every TPU generation (v7x has only 32 MiB scoped / 64 MiB physical).
    itemsize = jnp.dtype(logits.dtype).itemsize
    t_dtype = jnp.int8 if n_classes < 127 else jnp.int32
    bytes_per_lane = C * itemsize + jnp.dtype(t_dtype).itemsize
    per_buffer_budget = 8 * 1024 * 1024          # x2 double buffering -> <=16 MiB
    tile_cap = max(128, (per_buffer_budget // bytes_per_lane) // 128 * 128)
    hw_tile = min(max_tile, tile_cap, ((HW + 127) // 128) * 128)
    hw_pad = ((HW + hw_tile - 1) // hw_tile) * hw_tile
    num_tiles = hw_pad // hw_tile
    needs_mask = hw_pad != HW

    x = logits.reshape(N, C, HW)                 # keep native dtype for the DMA
    t = target.reshape(N, 1, HW)
    if needs_mask:
        x = jnp.pad(x, ((0, 0), (0, 0), (0, hw_pad - HW)))
        t = jnp.pad(t, ((0, 0), (0, 0), (0, hw_pad - HW)),
                    constant_values=n_classes)   # out-of-range class == padding
    t = t.astype(t_dtype)

    cost = pl.CostEstimate(
        flops=10 * N * C * hw_pad,
        transcendentals=N * C * hw_pad,
        bytes_accessed=(x.size * itemsize
                        + t.size * jnp.dtype(t_dtype).itemsize
                        + N * C * 128 * 4),
    )

    per_class = pl.pallas_call(
        functools.partial(_soft_iou_kernel, apply_mask=needs_mask),
        out_shape=jax.ShapeDtypeStruct((N, C, 128), jnp.float32),
        grid_spec=pltpu.PrefetchScalarGridSpec(
            num_scalar_prefetch=0,
            grid=(N, num_tiles),                 # spatial reduction axis last
            in_specs=[
                pl.BlockSpec((1, C, hw_tile), lambda n, s: (n, 0, s)),
                pl.BlockSpec((1, 1, hw_tile), lambda n, s: (n, 0, s)),
            ],
            out_specs=pl.BlockSpec((1, C, 128), lambda n, s: (n, 0, 0)),
            scratch_shapes=[
                pltpu.VMEM((C, 1), jnp.float32),   # inter accumulator
                pltpu.VMEM((C, 1), jnp.float32),   # sum(pred)+sum(onehot) acc
            ],
        ),
        compiler_params=pltpu.CompilerParams(
            dimension_semantics=("parallel", "arbitrary"),
        ),
        cost_estimate=cost,
    )(x, t)

    # -mean over the (N, C) per-class IoU matrix; lane 0 holds the value.
    return -jnp.mean(per_class[:, :, 0])


def _reference(logits, target, n_classes):
    N, C, H, W = logits.shape
    pred = jax.nn.softmax(logits.astype(jnp.float32), axis=1)
    onehot = jax.nn.one_hot(target, n_classes, dtype=jnp.float32)
    onehot = jnp.transpose(onehot, (0, 3, 1, 2))
    inter = (pred * onehot).reshape(N, C, -1).sum(2)
    union = (pred + onehot - pred * onehot).reshape(N, C, -1).sum(2)
    return -(inter / (union + 1e-16)).mean()


if __name__ == "__main__":
    N, C, H, W = 2, 4, 16, 16
    key = jax.random.PRNGKey(0)
    k1, k2 = jax.random.split(key)
    logits = jax.random.normal(k1, (N, C, H, W), dtype=jnp.float32)
    target = jax.random.randint(k2, (N, H, W), 0, C, dtype=jnp.int32)

    loss_fn = jax.jit(soft_iou_loss, static_argnums=(2,))
    loss = jax.block_until_ready(loss_fn(logits, target, C))
    ref = _reference(logits, target, C)
    assert jnp.allclose(loss, ref, atol=1e-5, rtol=1e-5), (loss, ref)
    print("KERNEL_OK")
</pallas_src>

<mosaic_0001>
module attributes {stable_mosaic.version = 11 : i64} {
  func.func @_soft_iou_kernel(%arg0: i32, %arg1: i32, %arg2: memref<1x4x256xf32, #tpu.memory_space<vmem>>, %arg3: memref<1x1x256xi8, #tpu.memory_space<vmem>>, %arg4: memref<1x4x128xf32, #tpu.memory_space<vmem>>, %arg5: memref<4x1xf32, #tpu.memory_space<vmem>>, %arg6: memref<4x1xf32, #tpu.memory_space<vmem>>) attributes {dimension_semantics = [#tpu.dimension_semantics<parallel>, #tpu.dimension_semantics<arbitrary>], iteration_bounds = array<i64: 2, 1>, scalar_prefetch = 0 : i64, scratch_operands = 2 : i64, tpu.core_type = #tpu.core_type<tc>, window_params = [{transform_indices = @transform_0, window_bounds = array<i64: 1, 4, 256>}, {transform_indices = @transform_1, window_bounds = array<i64: 1, 1, 256>}, {transform_indices = @transform_2, window_bounds = array<i64: 1, 4, 128>}]} {
    %c0_i32 = arith.constant 0 : i32
    %0 = arith.cmpi eq, %arg1, %c0_i32 : i32
    %1 = arith.extui %0 : i1 to i32
    %c0_i32_0 = arith.constant 0 : i32
    %2 = arith.cmpi ne, %1, %c0_i32_0 : i32
    scf.if %2 {
      %cst_20 = arith.constant 0.000000e+00 : f32
      %40 = vector.broadcast %cst_20 : f32 to vector<4x1xf32>
      %c0_21 = arith.constant 0 : index
      %c0_22 = arith.constant 0 : index
      %41 = vector.load %arg5[%c0_21, %c0_22] : memref<4x1xf32, #tpu.memory_space<vmem>>, vector<4x1xf32>
      tpu.vector_store %arg5[%c0_21, %c0_22], %40 {strides = array<i32>} : memref<4x1xf32, #tpu.memory_space<vmem>>, vector<4x1xf32>,
      %cst_23 = arith.constant 0.000000e+00 : f32
      %42 = vector.broadcast %cst_23 : f32 to vector<4x1xf32>
      %c0_24 = arith.constant 0 : index
      %c0_25 = arith.constant 0 : index
      %43 = vector.load %arg6[%c0_24, %c0_25] : memref<4x1xf32, #tpu.memory_space<vmem>>, vector<4x1xf32>
      tpu.vector_store %arg6[%c0_24, %c0_25], %42 {strides = array<i32>} : memref<4x1xf32, #tpu.memory_space<vmem>>, vector<4x1xf32>,
    } else {
    }
    %c0 = arith.constant 0 : index
    %c0_1 = arith.constant 0 : index
    %c0_2 = arith.constant 0 : index
    %3 = vector.load %arg2[%c0, %c0_1, %c0_2] : memref<1x4x256xf32, #tpu.memory_space<vmem>>, vector<1x4x256xf32>
    %4 = vector.shape_cast %3 : vector<1x4x256xf32> to vector<4x256xf32>
    %c0_3 = arith.constant 0 : index
    %c0_4 = arith.constant 0 : index
    %c0_5 = arith.constant 0 : index
    %5 = vector.load %arg3[%c0_3, %c0_4, %c0_5] : memref<1x1x256xi8, #tpu.memory_space<vmem>>, vector<1x1x256xi8>
    %6 = vector.shape_cast %5 : vector<1x1x256xi8> to vector<1x256xi8>
    %7 = arith.extsi %6 : vector<1x256xi8> to vector<1x256xi32>
    %cst = arith.constant dense<0xFF800000> : vector<256xf32>
    %8 = vector.multi_reduction <maximumf>, %4, %cst [0] : vector<4x256xf32> to vector<256xf32>
    %9 = vector.shape_cast %8 : vector<256xf32> to vector<1x256xf32>
    %10 = vector.broadcast %9 : vector<1x256xf32> to vector<4x256xf32>
    %11 = arith.subf %4, %10 : vector<4x256xf32>
    %12 = math.exp %11 : vector<4x256xf32>
    %cst_6 = arith.constant dense<0.000000e+00> : vector<256xf32>
    %13 = vector.multi_reduction <add>, %12, %cst_6 [0] : vector<4x256xf32> to vector<256xf32>
    %14 = vector.shape_cast %13 : vector<256xf32> to vector<1x256xf32>
    %15 = tpu.reciprocal %14 : vector<1x256xf32> -> vector<1x256xf32>
    %16 = vector.broadcast %15 : vector<1x256xf32> to vector<4x256xf32>
    %17 = arith.mulf %12, %16 : vector<4x256xf32>
    %18 = tpu.iota {dimensions = array<i32: 0>} : vector<4x256xi32>
    %19 = vector.broadcast %7 : vector<1x256xi32> to vector<4x256xi32>
    %20 = arith.cmpi eq, %18, %19 : vector<4x256xi32>
    %21 = arith.extui %20 : vector<4x256xi1> to vector<4x256xi32>
    %22 = arith.sitofp %21 : vector<4x256xi32> to vector<4x256xf32>
    %c0_7 = arith.constant 0 : index
    %c0_8 = arith.constant 0 : index
    %23 = vector.load %arg5[%c0_7, %c0_8] : memref<4x1xf32, #tpu.memory_space<vmem>>, vector<4x1xf32>
    %24 = arith.mulf %17, %22 : vector<4x256xf32>
    %cst_9 = arith.constant dense<0.000000e+00> : vector<4xf32>
    %25 = vector.multi_reduction <add>, %24, %cst_9 [1] : vector<4x256xf32> to vector<4xf32>
    %26 = vector.shape_cast %25 : vector<4xf32> to vector<4x1xf32>
    %27 = arith.addf %23, %26 : vector<4x1xf32>
    %c0_10 = arith.constant 0 : index
    %c0_11 = arith.constant 0 : index
    %28 = vector.load %arg5[%c0_10, %c0_11] : memref<4x1xf32, #tpu.memory_space<vmem>>, vector<4x1xf32>
    tpu.vector_store %arg5[%c0_10, %c0_11], %27 {strides = array<i32>} : memref<4x1xf32, #tpu.memory_space<vmem>>, vector<4x1xf32>,
    %c0_12 = arith.constant 0 : index
    %c0_13 = arith.constant 0 : index
    %29 = vector.load %arg6[%c0_12, %c0_13] : memref<4x1xf32, #tpu.memory_space<vmem>>, vector<4x1xf32>
    %cst_14 = arith.constant dense<0.000000e+00> : vector<4xf32>
    %30 = vector.multi_reduction <add>, %17, %cst_14 [1] : vector<4x256xf32> to vector<4xf32>
    %31 = vector.shape_cast %30 : vector<4xf32> to vector<4x1xf32>
    %cst_15 = arith.constant dense<0.000000e+00> : vector<4xf32>
    %32 = vector.multi_reduction <add>, %22, %cst_15 [1] : vector<4x256xf32> to vector<4xf32>
    %33 = vector.shape_cast %32 : vector<4xf32> to vector<4x1xf32>
    %34 = arith.addf %31, %33 : vector<4x1xf32>
    %35 = arith.addf %29, %34 : vector<4x1xf32>
    %c0_16 = arith.constant 0 : index
    %c0_17 = arith.constant 0 : index
    %36 = vector.load %arg6[%c0_16, %c0_17] : memref<4x1xf32, #tpu.memory_space<vmem>>, vector<4x1xf32>
    tpu.vector_store %arg6[%c0_16, %c0_17], %35 {strides = array<i32>} : memref<4x1xf32, #tpu.memory_space<vmem>>, vector<4x1xf32>,
    %c0_i32_18 = arith.constant 0 : i32
    %37 = arith.cmpi eq, %arg1, %c0_i32_18 : i32
    %38 = arith.extui %37 : i1 to i32
    %c0_i32_19 = arith.constant 0 : i32
    %39 = arith.cmpi ne, %38, %c0_i32_19 : i32
    scf.if %39 {
      %c0_20 = arith.constant 0 : index
      %c0_21 = arith.constant 0 : index
      %40 = vector.load %arg5[%c0_20, %c0_21] : memref<4x1xf32, #tpu.memory_space<vmem>>, vector<4x1xf32>
      %c0_22 = arith.constant 0 : index
      %c0_23 = arith.constant 0 : index
      %41 = vector.load %arg6[%c0_22, %c0_23] : memref<4x1xf32, #tpu.memory_space<vmem>>, vector<4x1xf32>
      %42 = arith.subf %41, %40 : vector<4x1xf32>
      %cst_24 = arith.constant 1.000000e-16 : f32
      %43 = vector.broadcast %cst_24 : f32 to vector<4x1xf32>
      %44 = arith.addf %42, %43 : vector<4x1xf32>
      %45 = arith.divf %40, %44 : vector<4x1xf32>
      %46 = vector.shape_cast %45 : vector<4x1xf32> to vector<4x1xf32>
      %47 = vector.broadcast %46 : vector<4x1xf32> to vector<4x128xf32>
      %c0_25 = arith.constant 0 : index
      %c0_26 = arith.constant 0 : index
      %c0_27 = arith.constant 0 : index
      %48 = vector.load %arg4[%c0_25, %c0_26, %c0_27] : memref<1x4x128xf32, #tpu.memory_space<vmem>>, vector<1x4x128xf32>
      %49 = vector.shape_cast %48 : vector<1x4x128xf32> to vector<4x128xf32>
      %50 = vector.shape_cast %47 : vector<4x128xf32> to vector<1x4x128xf32>
      tpu.vector_store %arg4[%c0_25, %c0_26, %c0_27], %50 {strides = array<i32>} : memref<1x4x128xf32, #tpu.memory_space<vmem>>, vector<1x4x128xf32>,
    } else {
    }
    return
  }
  func.func @transform_0(%arg0: i32, %arg1: i32) -> (i32, i32, i32) {
    %c0_i32 = arith.constant 0 : i32
    %c0_i32_0 = arith.constant 0 : i32
    return %arg0, %c0_i32, %arg1 : i32, i32, i32
  }
  func.func @transform_1(%arg0: i32, %arg1: i32) -> (i32, i32, i32) {
    %c0_i32 = arith.constant 0 : i32
    %c0_i32_0 = arith.constant 0 : i32
    return %arg0, %c0_i32, %arg1 : i32, i32, i32
  }
  func.func @transform_2(%arg0: i32, %arg1: i32) -> (i32, i32, i32) {
    %c0_i32 = arith.constant 0 : i32
    %c0_i32_0 = arith.constant 0 : i32
    %c0_i32_1 = arith.constant 0 : i32
    return %arg0, %c0_i32, %c0_i32_0 : i32, i32, i32
  }
}

</mosaic_0001>

<llo_original>
// kernel: soft_iou_loss.1
$region0: #{soft_iou_loss.1}
  #allocation0 [shape = 'u32[]', space=smem, size = 0x4, offset = 0x4, fixed_abs, tag = 'smem constant byte address 0x4 - core index']
  #allocation1 [shape = 'u32[144,128]{1,0:T(1,128)}', space=vmem, size = 0x12000, scoped, tag = 'internal scratch']
  #allocation2 [shape = 'f32[4,1]{1,0:T(4,128)}', space=vmem, size = 0x800, scoped, tag = 'scratch operand']
  #allocation3 [shape = 'f32[4,1]{1,0:T(4,128)}', space=vmem, size = 0x800, scoped, tag = 'scratch operand']
  %s0 = inlined_call_operand.vmem [shape: f32[2,4,256], index: 0, kind: input, shape index: {}]
  %s1 = inlined_call_operand.vmem [shape: s8[2,1,256], index: 1, kind: input, shape index: {}]
  %s2 = inlined_call_operand.vmem [shape: f32[2,4,128], index: 2, kind: output, shape index: {}]
  %s3 = sld [smem:[#allocation0]]
  $region49: #{soft_iou_loss.1} parent=0
    _
  %s5 = ssub.s32 1, %s3
  %s6 = scalar_select 0, %s5, %s3
  loop: start=0, step=1, limit=4
  $region2: #{soft_iou_loss.1} parent=0 // loop_pre_header
    _
  $region3: #{soft_iou_loss.1} parent=0 // loop_header
    %s8 = sphi 0, %s12
    %p9 = scmp.ge.s32.totalorder %s8, 4
    %s15 = sphi 0, %s27
    %s16 = sphi 0, %s23
    %s17 = sphi 0, %s15
    %s18 = sphi 0, %s16
    %s19 = sphi 0, %s17
    %s20 = sphi 0, %s18
    %s32 = sphi 0, %s34
    %s35 = sphi 0, %s32
    %s36 = sphi 0, %s35
    %s52 = sphi 0, %s36
    %s60 = sphi 0, %s62
    %s63 = sphi 0, %s60
    %s64 = sphi 0, %s63
    %s80 = sphi 0, %s64
    %s86 = sphi 0, %s88
    %s89 = sphi 0, %s86
    %s90 = sphi 0, %s89
    %s106 = sphi 0, %s90
  $region4: #{soft_iou_loss.1} parent=0 // loop_header_branch
    %11 = sbr.rel (%p9) target = $region8
  $region5: #{soft_iou_loss.1} parent=0 // loop_body
    %s13 = ssub.s32 %s8, 1
    %s14 = ssub.s32 %s8, 2
    %s21 = sadd.s32 1, %s16
    %p22 = scmp.ge.s32.totalorder %s21, 1
    %s23 = scalar_select %p22, 0, %s21
    %s24 = sadd.s32 1, %s15
    %s25 = scalar_select %p22, %s24, %s15
    %p26 = scmp.ge.s32.totalorder %s25, 2
    %s27 = scalar_select %p26, 0, %s25
    %s28 = ssub.s32 %s15, %s27
    %s29 = ssub.s32 %s16, %s23
    %s30 = sor.u32 %s28, %s29
    %p31 = scmp.eq.s32.totalorder %s30, 0
    %s33 = sadd.s32 %s32, 1
    %s34 = scalar_select %p31, %s32, %s33
    %p37 = pneg %p31
    %p38 = scmp.eq.s32.totalorder %s8, 1
    %p39 = por %p37, %p38
    %p40 = scmp.ne.s32.totalorder %s32, %s35
    %p41 = scmp.eq.s32.totalorder %s8, 0
    %p42 = por %p40, %p41
    %p43 = scmp.ne.s32.totalorder %s32, %s35
    %p44 = scmp.eq.s32.totalorder %s13, 1
    %p45 = por %p43, %p44
    %p46 = scmp.ne.s32.totalorder %s35, %s36
    %p47 = scmp.eq.s32.totalorder %s13, 0
    %p48 = por %p46, %p47
    %p49 = scmp.ne.s32.totalorder %s35, %s36
    %p50 = scmp.eq.s32.totalorder %s14, 1
    %p51 = por %p49, %p50
    %p53 = scmp.ne.s32.totalorder %s36, %s52
    %p54 = scmp.eq.s32.totalorder %s14, 0
    %p55 = por %p53, %p54
    %s56 = ssub.s32 %s15, %s27
    %s57 = ssub.s32 %s16, %s23
    %s58 = sor.u32 %s56, %s57
    %p59 = scmp.eq.s32.totalorder %s58, 0
    %s61 = sadd.s32 %s60, 1
    %s62 = scalar_select %p59, %s60, %s61
    %p65 = pneg %p59
    %p66 = scmp.eq.s32.totalorder %s8, 1
    %p67 = por %p65, %p66
    %p68 = scmp.ne.s32.totalorder %s60, %s63
    %p69 = scmp.eq.s32.totalorder %s8, 0
    %p70 = por %p68, %p69
    %p71 = scmp.ne.s32.totalorder %s60, %s63
    %p72 = scmp.eq.s32.totalorder %s13, 1
    %p73 = por %p71, %p72
    %p74 = scmp.ne.s32.totalorder %s63, %s64
    %p75 = scmp.eq.s32.totalorder %s13, 0
    %p76 = por %p74, %p75
    %p77 = scmp.ne.s32.totalorder %s63, %s64
    %p78 = scmp.eq.s32.totalorder %s14, 1
    %p79 = por %p77, %p78
    %p81 = scmp.ne.s32.totalorder %s64, %s80
    %p82 = scmp.eq.s32.totalorder %s14, 0
    %p83 = por %p81, %p82
    %s84 = ssub.s32 %s15, %s27
    %p85 = scmp.eq.s32.totalorder %s84, 0
    %s87 = sadd.s32 %s86, 1
    %s88 = scalar_select %p85, %s86, %s87
    %p91 = pneg %p85
    %p92 = scmp.eq.s32.totalorder %s8, 1
    %p93 = por %p91, %p92
    %p94 = scmp.ne.s32.totalorder %s86, %s89
    %p95 = scmp.eq.s32.totalorder %s8, 0
    %p96 = por %p94, %p95
    %p97 = scmp.ne.s32.totalorder %s86, %s89
    %p98 = scmp.eq.s32.totalorder %s13, 1
    %p99 = por %p97, %p98
    %p100 = scmp.ne.s32.totalorder %s89, %s90
    %p101 = scmp.eq.s32.totalorder %s13, 0
    %p102 = por %p100, %p101
    %p103 = scmp.ne.s32.totalorder %s89, %s90
    %p104 = scmp.eq.s32.totalorder %s14, 1
    %p105 = por %p103, %p104
    %p107 = scmp.ne.s32.totalorder %s90, %s106
    %p108 = scmp.eq.s32.totalorder %s14, 0
    %p109 = por %p107, %p108
    %p110 = scmp.le.s32.totalorder 1, %s8
    %p111 = scmp.lt.s32.totalorder %s8, 3
    %p112 = pnand %p110, %p111
    %p113 = pneg %p112
    // Predicated region
    $region9: #{soft_iou_loss.1} parent=5 // pred_check
      _
    $region10: #{soft_iou_loss.1} parent=5 // pred_check_branch
      %115 = sbr.rel (%p112) target = $region12
    $region11: #{soft_iou_loss.1} parent=5 // pred_region
      %s116 = ssub.s32 %s8, 1
    $region12: #{soft_iou_loss.1} parent=5 // pred_fallthru
      _
    %p117 = scmp.lt.s32.totalorder %s8, 2
    // Predicated region
    $region13: #{soft_iou_loss.1} parent=5 // pred_check
      %p118 = pneg %p117
    $region14: #{soft_iou_loss.1} parent=5 // pred_check_branch
      %120 = sbr.rel (%p118) target = $region16
    $region15: #{soft_iou_loss.1} parent=5 // pred_region
      // Predicated region
      $region17: #{soft_iou_loss.1} parent=15 // pred_check
        %p121 = pneg %p42
      $region18: #{soft_iou_loss.1} parent=15 // pred_check_branch
        %123 = sbr.rel (%p121) target = $region20
      $region19: #{soft_iou_loss.1} parent=15 // pred_region
        %s124 = smul.u32 2, %s16
        %p125 = scmp.lt.s32.totalorder %s15, 1
        %s126 = scalar_select %p125, %s15, 1
        %p127 = scmp.lt.s32.totalorder %s124, 1
        %s128 = scalar_select %p127, %s124, 1
        %s129 = smul.addr %s126, 2
        %s130 = sadd.s32 %s128, %s129
        %s131 = smul.addr %s130, 4
        %s132 = scalar_lea.vmem %s0, %s131
        %s133 = smul.u32 2, %s16
      $region20: #{soft_iou_loss.1} parent=15 // pred_fallthru
        _
      // Predicated region
      $region21: #{soft_iou_loss.1} parent=15 // pred_check
        %p134 = pneg %p70
      $region22: #{soft_iou_loss.1} parent=15 // pred_check_branch
        %136 = sbr.rel (%p134) target = $region24
      $region23: #{soft_iou_loss.1} parent=15 // pred_region
        %s137 = smul.u32 2, %s16
        %p138 = scmp.lt.s32.totalorder %s15, 1
        %s139 = scalar_select %p138, %s15, 1
        %p140 = scmp.lt.s32.totalorder %s137, 1
        %s141 = scalar_select %p140, %s137, 1
        %s142 = smul.addr %s139, 2
        %s143 = sadd.s32 %s141, %s142
        %s144 = scalar_lea.vmem %s1, %s143
        %s145 = smul.u32 2, %s16
      $region24: #{soft_iou_loss.1} parent=15 // pred_fallthru
        _
    $region16: #{soft_iou_loss.1} parent=5 // pred_fallthru
      _
    %p146 = scmp.le.s32.totalorder 1, %s8
    %p147 = scmp.lt.s32.totalorder %s8, 3
    %p148 = pnand %p146, %p147
    %p149 = pneg %p148
    // Predicated region
    $region25: #{soft_iou_loss.1} parent=5 // pred_check
      _
    $region26: #{soft_iou_loss.1} parent=5 // pred_check_branch
      %151 = sbr.rel (%p148) target = $region28
    $region27: #{soft_iou_loss.1} parent=5 // pred_region
      %s152 = ssub.s32 %s8, 1
      %s153 = smul.u32 2, %s18
      %p154 = scmp.lt.s32.totalorder %s17, 1
      %s155 = scalar_select %p154, %s17, 1
      %p156 = scmp.lt.s32.totalorder %s153, 1
      %s157 = scalar_select %p156, %s153, 1
      %s158 = smul.addr %s155, 2
      %s159 = sadd.s32 %s157, %s158
      %s160 = smul.addr %s159, 4
      %s161 = scalar_lea.vmem %s0, %s160
      %p162 = pneg %p48
      %p163 = pneg %p45
      %s164 = smul.u32 2, %s18
      %p165 = scmp.lt.s32.totalorder %s17, 1
      %s166 = scalar_select %p165, %s17, 1
      %p167 = scmp.lt.s32.totalorder %s164, 1
      %s168 = scalar_select %p167, %s164, 1
      %s169 = smul.addr %s166, 2
      %s170 = sadd.s32 %s168, %s169
      %s171 = scalar_lea.vmem %s1, %s170
      %p172 = pneg %p76
      %p173 = pneg %p73
      %p174 = pneg %p102
      %p175 = pneg %p99
      %p176 = scmp.lt.s32.totalorder %s17, 1
      %s177 = scalar_select %p176, %s17, 1
      %s178 = smul.addr %s177, 4
      %s179 = scalar_lea.vmem %s2, %s178
      %s180 = smul.u32 2, %s18
      %p181 = scmp.lt.s32.totalorder %s17, 1
      %s182 = scalar_select %p181, %s17, 1
      %p183 = scmp.lt.s32.totalorder %s180, 1
      %s184 = scalar_select %p183, %s180, 1
      %s185 = smul.addr %s182, 2
      %s186 = sadd.s32 %s184, %s185
      %s187 = smul.addr %s186, 4
      %s188 = scalar_lea.vmem %s0, %s187
      %s189 = smul.u32 2, %s18
      %s190 = smul.u32 2, %s18
      %p191 = scmp.lt.s32.totalorder %s17, 1
      %s192 = scalar_select %p191, %s17, 1
      %p193 = scmp.lt.s32.totalorder %s190, 1
      %s194 = scalar_select %p193, %s190, 1
      %s195 = smul.addr %s192, 2
      %s196 = sadd.s32 %s194, %s195
      %s197 = scalar_lea.vmem %s1, %s196
      %s198 = smul.u32 2, %s18
      %p199 = scmp.lt.s32.totalorder %s17, 1
      %s200 = scalar_select %p199, %s17, 1
      %s201 = smul.addr %s200, 4
      %s202 = scalar_lea.vmem %s2, %s201
      %p203 = scmp.eq.s32.totalorder %s18, 0
      // Predicated region
      $region29: #{soft_iou_loss.1} parent=27 // pred_check
        %p204 = pneg %p203
      $region30: #{soft_iou_loss.1} parent=27 // pred_check_branch
        %206 = sbr.rel (%p204) target = $region32
      $region31: #{soft_iou_loss.1} parent=27 // pred_region
        %vm207 = vcmask 3072
        %208 = vst.msk [vmem:[#allocation2] sm:$0xf] %vm207, 0.0
        %209 = vst.msk [vmem:[#allocation3] sm:$0xf] %vm207, 0.0
      $region32: #{soft_iou_loss.1} parent=27 // pred_fallthru
        _
      %v210 = vld [vmem:[%s188] sm:$0xff]
      %v211 = vld [vmem:[%s197] sm:$0x3]
      %v212 = vunpack.c.0.s8 %v211
      %v214 = vcombine.high %v210, %v210
      %vm216 = vcmask 1043456
      %v217 = vsel %vm216, %v210, -inf
      %v218 = vrot.slane %v217, 4
      %v219 = vmax.f32 %v217, %v218
      %v220 = vrot.slane %v219, 2
      %v221 = vmax.f32 %v219, %v220
      %v222 = vrot.slane %v221, 1
      %v223 = vmax.f32 %v221, %v222
      %v224 = vsel %vm216, %v214, -inf
      %v225 = vrot.slane %v224, 4
      %v226 = vmax.f32 %v224, %v225
      %v227 = vrot.slane %v226, 2
      %v228 = vmax.f32 %v226, %v227
      %v229 = vrot.slane %v228, 1
      %v230 = vmax.f32 %v228, %v229
      %v233 = vcombine.low %v223, %v230
      %v235 = vsub.f32 %v210, %v233
      %v236 = vmul.f32 %v235, 1.442695
      %v237 = vpow.pop %v236
      %v239 = vcombine.high %v237, %v237
      %v241 = vsel %vm216, %v237, 0.0
      %v242 = vrot.slane %v241, 4
      %v243 = vadd.f32 %v241, %v242
      %v244 = vrot.slane %v243, 2
      %v245 = vadd.f32 %v243, %v244
      %v246 = vrot.slane %v245, 1
      %v247 = vadd.f32 %v245, %v246
      %v248 = vsel %vm216, %v239, 0.0
      %v249 = vrot.slane %v248, 4
      %v250 = vadd.f32 %v248, %v249
      %v251 = vrot.slane %v250, 2
      %v252 = vadd.f32 %v250, %v251
      %v253 = vrot.slane %v252, 1
      %v254 = vadd.f32 %v252, %v253
      %v255 = vrcp.pop %v247
      %v256 = vrcp.pop %v254
      %v259 = vcombine.low %v255, %v256
      %v261 = vmul.f32 %v237, %v259
      %v262 = vlaneseq
      %v263 = vshrl.u32 %v262, 7
      %v264 = vlaneseq
      %v265 = vshrl.u32 %v264, 7
      %v266 = vsub.s32 0, %v265
      %v267 = vrot.slane %v212, %v266
      %v268 = vlaneseq
      %v269 = vshrl.u32 %v268, 7
      %v270 = vsub.s32 4, %v269
      %v271 = vrot.slane %v212, %v270
      %v272 = vlaneseq
      %v273 = vshrl.u32 %v272, 7
      %v274 = vsub.s32 0, %v273
      %v275 = vrot.slane %v267, %v274
      %v276 = vlaneseq
      %v277 = vshrl.u32 %v276, 7
      %v278 = vsub.s32 0, %v277
      %v279 = vrot.slane %v271, %v278
      %vm280 = vcmp.eq.s32.totalorder %v263, %v275
      %vm281 = vcmp.eq.s32.totalorder %v263, %v279
      %v282 = vsel %vm280, 1, 0
      %v283 = vsel %vm281, 1, 0
      %v284 = vcvt.s32.f32 %v282
      %v285 = vcvt.s32.f32 %v283
      %v286 = vld [vmem:[#allocation2] sm:$0xf]
      %v289 = vcombine.low %v284, %v285
      %v291 = vmul.f32 %v261, %v289
      %v293 = vcombine.high %v291, %v291
      %v295 = vsel %vm216, %v291, 0.0
      %v296 = vsel %vm216, %v293, 0.0
      %v297 = vadd.f32 %v295, %v296
      %298 = vadd.xlane.f32.xlu0 %v297
      %v299 = vpop.xlane.xlu0 %298
      %v300 = vadd.f32 %v286, %v299
      %vm301 = vcmask 3072
      %302 = vst.msk [vmem:[#allocation2] sm:$0xf] %vm301, %v300
      %v303 = vld [vmem:[#allocation3] sm:$0xf]
      %v305 = vcombine.high %v261, %v261
      %v307 = vsel %vm216, %v261, 0.0
      %v308 = vsel %vm216, %v305, 0.0
      %v309 = vadd.f32 %v307, %v308
      %310 = vadd.xlane.f32.xlu0 %v309
      %v311 = vpop.xlane.xlu0 %310
      %v312 = vsel %vm216, %v284, 0.0
      %v313 = vsel %vm216, %v285, 0.0
      %v314 = vadd.f32 %v312, %v313
      %315 = vadd.xlane.f32.xlu0 %v314
      %v316 = vpop.xlane.xlu0 %315
      %v317 = vadd.f32 %v311, %v316
      %v318 = vadd.f32 %v303, %v317
      %319 = vst.msk [vmem:[#allocation3] sm:$0xf] %vm301, %v318
      // Predicated region
      $region33: #{soft_iou_loss.1} parent=27 // pred_check
        %p320 = pneg %p203
      $region34: #{soft_iou_loss.1} parent=27 // pred_check_branch
        %322 = sbr.rel (%p320) target = $region36
      $region35: #{soft_iou_loss.1} parent=27 // pred_region
        %v323 = vld [vmem:[#allocation2] sm:$0xf]
        %v324 = vld [vmem:[#allocation3] sm:$0xf]
        %v325 = vsub.f32 %v324, %v323
        %v326 = vadd.f32 %v325, 1e-16
        %v327 = vrcp.pop %v326
        %v328 = vmul.f32 %v323, %v327
        %330 = vset.pattern.permute.xlu0 0
        %331 = vperm.xlu0 %330, %v328
        %v332 = vpop.permute.xlu0 %331
        %334 = vst [vmem:[%s202] sm:$0xf] %v332
      $region36: #{soft_iou_loss.1} parent=27 // pred_fallthru
        _
      %p335 = scmp.lt.s32.totalorder %s17, 1
      %s336 = scalar_select %p335, %s17, 1
      %s337 = smul.addr %s336, 4
      %s338 = scalar_lea.vmem %s2, %s337
      // Predicated region
      $region37: #{soft_iou_loss.1} parent=27 // pred_check
        %p339 = pneg %p99
      $region38: #{soft_iou_loss.1} parent=27 // pred_check_branch
        %341 = sbr.rel (%p339) target = $region40
      $region39: #{soft_iou_loss.1} parent=27 // pred_region
        _
      $region40: #{soft_iou_loss.1} parent=27 // pred_fallthru
        _
    $region28: #{soft_iou_loss.1} parent=5 // pred_fallthru
      _
    %p342 = scmp.le.s32.totalorder 2, %s8
    // Predicated region
    $region41: #{soft_iou_loss.1} parent=5 // pred_check
      %p343 = pneg %p342
    $region42: #{soft_iou_loss.1} parent=5 // pred_check_branch
      %345 = sbr.rel (%p343) target = $region44
    $region43: #{soft_iou_loss.1} parent=5 // pred_region
      %s346 = ssub.s32 %s8, 2
      // Predicated region
      $region45: #{soft_iou_loss.1} parent=43 // pred_check
        %p347 = pneg %p105
      $region46: #{soft_iou_loss.1} parent=43 // pred_check_branch
        %349 = sbr.rel (%p347) target = $region48
      $region47: #{soft_iou_loss.1} parent=43 // pred_region
        %p350 = scmp.lt.s32.totalorder %s19, 1
        %s351 = scalar_select %p350, %s19, 1
        %s352 = smul.addr %s351, 4
        %s353 = scalar_lea.vmem %s2, %s352
      $region48: #{soft_iou_loss.1} parent=43 // pred_fallthru
        _
    $region44: #{soft_iou_loss.1} parent=5 // pred_fallthru
      _
  $region6: #{soft_iou_loss.1} parent=0 // loop_footer
    %s12 = sadd.s32 1, %s8
  $region7: #{soft_iou_loss.1} parent=0 // loop_footer_branch
    %7 = sbr.rel target = $region3
  $region8: #{soft_iou_loss.1} parent=0 // loop_exit
    _

</llo_original>
